<compile_context>
chip_gen: v7x
topology: tpu7x:2x2x1
jax: 0.10.0
libtpu: 0.0.40
codegen_flags: <defaults>
</compile_context>

<pallas_src>
import functools
from typing import NamedTuple

import jax
import jax.numpy as jnp
from jax.experimental import pallas as pl
from jax.experimental.pallas import tpu as pltpu


def _round_up(x, m):
    return (x + m - 1) // m * m


class SvdWeights(NamedTuple):
    """Pre-folded / pre-padded SvdLayer weights (built once, reused per call)."""
    vts: jax.Array    # (h_in, rank_p)    = V_r^T @ diag(s), MXU dtype, zero-padded
    ut: jax.Array     # (rank_p, h_out_p) = U_r^T,           MXU dtype, zero-padded
    bias: jax.Array   # (1, h_out_p) f32, zero-padded
    gamma: jax.Array  # (1, h_out_p) f32, zero-padded
    beta: jax.Array   # (1, h_out_p) f32, zero-padded
    h_in: int
    h_out: int


def prepare_svd_weights(params, *, mxu_dtype=jnp.bfloat16):
    """One-time weight preprocessing: fold diag(s) into V^T, transpose U,
    zero-pad feature dims to lane multiples and cast to the MXU dtype.

    Hoisted out of the per-call path (serving loops call this once).
    params = (u_r, s_vec, v_r, bias, gamma, beta):
      u_r (h_out, rank), s_vec (rank,), v_r (rank, h_in), bias/gamma/beta (h_out,).
    """
    u_r, s_vec, v_r, bias, gamma, beta = params
    h_out, rank = u_r.shape
    _, h_in = v_r.shape

    # x @ V_r^T @ diag(s) @ U_r^T + b == x @ (V_r^T * s) @ U_r^T + b
    vts = (v_r.T * s_vec[None, :]).astype(mxu_dtype)   # (h_in, rank)
    ut = u_r.T.astype(mxu_dtype)                       # (rank, h_out)

    rank_p = _round_up(rank, 128)
    h_out_p = _round_up(h_out, 128)

    # Zero padding is load-bearing: the in-kernel LayerNorm sums run over the
    # padded width and rely on padded columns of ut/bias being exactly zero.
    if rank_p != rank:
        vts = jnp.pad(vts, ((0, 0), (0, rank_p - rank)))
        ut = jnp.pad(ut, ((0, rank_p - rank), (0, 0)))
    if h_out_p != h_out:
        ut = jnp.pad(ut, ((0, 0), (0, h_out_p - h_out)))

    def pad_vec(v):
        v = v.reshape(1, h_out).astype(jnp.float32)
        if h_out_p != h_out:
            v = jnp.pad(v, ((0, 0), (0, h_out_p - h_out)))
        return v

    return SvdWeights(vts=vts, ut=ut, bias=pad_vec(bias), gamma=pad_vec(gamma),
                      beta=pad_vec(beta), h_in=h_in, h_out=h_out)


def _svd_layer_kernel(x_ref, vts_ref, ut_ref, b_ref, g_ref, beta_ref, o_ref, *,
                      eps, n_features, n_features_padded, mxu_dtype):
    # x tile: (TM, h_in) rows of the flattened hidden_states.
    x = x_ref[...].astype(mxu_dtype)

    # dense_v with diag(s) pre-folded: (TM, h_in) @ (h_in, rank_p) -> f32 acc.
    t = jnp.dot(x, vts_ref[...], preferred_element_type=jnp.float32)
    # dense_u: (TM, rank_p) @ (rank_p, h_out_p) + bias, f32 accumulation.
    t = jnp.dot(t.astype(mxu_dtype), ut_ref[...],
                preferred_element_type=jnp.float32)
    t = t + b_ref[...]

    # dropout: identity in eval mode.
    # TODO(synk): training-mode dropout (pltpu.prng_random_bits mask) not implemented.

    # LayerNorm over the REAL feature count.  Padded columns of ut/bias are
    # exactly zero (invariant enforced in prepare_svd_weights), so the full
    # width sum equals the real-column sum; the centered pass masks padded
    # lanes explicitly so they don't contribute (-mean)^2 to the variance.
    inv_n = 1.0 / float(n_features)
    mean = jnp.sum(t, axis=-1, keepdims=True) * inv_n
    centered = t - mean
    if n_features_padded != n_features:
        lane = jax.lax.broadcasted_iota(jnp.int32, centered.shape, 1)
        centered = jnp.where(lane < n_features, centered, 0.0)
    var = jnp.sum(centered * centered, axis=-1, keepdims=True) * inv_n
    normed = centered * jax.lax.rsqrt(var + eps)
    o_ref[...] = (normed * g_ref[...] + beta_ref[...]).astype(o_ref.dtype)


def svd_layer_forward(hidden_states, input_tensor, weights, *, tm=512, eps=1e-12,
                      out_dtype=None, vmem_budget_bytes=28 * 1024 * 1024):
    """Pallas SvdLayer.forward.

    `input_tensor` is accepted but unused, matching the PyTorch forward exactly
    (the reference never adds the residual).  `weights` comes from
    prepare_svd_weights().
    """
    del input_tensor  # unused by the reference forward
    B, S, h_in = hidden_states.shape
    assert h_in == weights.h_in, "hidden size mismatch with prepared weights"
    rank_p, h_out_p = weights.ut.shape
    h_out = weights.h_out
    out_dtype = hidden_states.dtype if out_dtype is None else out_dtype
    mxu_dtype = weights.vts.dtype

    M = B * S
    x2d = hidden_states.reshape(M, h_in)          # no pad, no copy of activations

    x_bytes = x2d.dtype.itemsize
    w_bytes = jnp.dtype(mxu_dtype).itemsize
    o_bytes = jnp.dtype(out_dtype).itemsize

    # --- row-tile selection under an explicit VMEM budget ---------------------
    def vmem_est(t):
        return (2 * t * h_in * x_bytes                              # x tile (2 bufs)
                + 2 * t * h_out_p * o_bytes                         # out tile (2 bufs)
                + (h_in * rank_p + rank_p * h_out_p) * w_bytes      # weights (1x)
                + 3 * h_out_p * 4                                   # bias/gamma/beta
                + t * (rank_p + 2 * h_out_p) * 4)                   # f32 intermediates

    tm_eff = min(tm, _round_up(M, 8))
    while tm_eff > 8 and vmem_est(tm_eff) > vmem_budget_bytes:
        tm_eff = _round_up(tm_eff // 2, 8)
    # v7x: 2 TensorCores share the ("parallel",) row axis -- don't run a
    # one-step grid when there's enough work to split across both cores.
    if M >= 256 and pl.cdiv(M, tm_eff) < 2:
        tm_eff = _round_up(pl.cdiv(M, 2), 8)

    grid = (pl.cdiv(M, tm_eff),)   # ragged last tile: OOB rows masked on store

    kernel = functools.partial(
        _svd_layer_kernel, eps=eps, n_features=h_out,
        n_features_padded=h_out_p, mxu_dtype=mxu_dtype)

    cost = pl.CostEstimate(
        flops=2 * M * (h_in * rank_p + rank_p * h_out_p) + 10 * M * h_out_p,
        transcendentals=0,
        bytes_accessed=(M * h_in * x_bytes + M * h_out_p * o_bytes
                        + (h_in * rank_p + rank_p * h_out_p) * w_bytes))

    compiler_params = pltpu.CompilerParams(
        dimension_semantics=("parallel",),
        vmem_limit_bytes=int(min(40 << 20, max(16 << 20, 2 * vmem_est(tm_eff)))))

    def call_kernel(single_buffer_weights):
        if single_buffer_weights:
            # Grid-invariant operands: single-buffer to halve resident weight VMEM.
            inv = lambda shape: pl.BlockSpec(shape, lambda i: (0, 0),
                                             pipeline_mode=pl.Buffered(1))
        else:
            inv = lambda shape: pl.BlockSpec(shape, lambda i: (0, 0))
        return pl.pallas_call(
            kernel,
            out_shape=jax.ShapeDtypeStruct((M, h_out_p), out_dtype),
            grid_spec=pltpu.PrefetchScalarGridSpec(
                num_scalar_prefetch=0,
                grid=grid,
                in_specs=[
                    pl.BlockSpec((tm_eff, h_in), lambda i: (i, 0)),  # x rows
                    inv((h_in, rank_p)),        # V_r^T * diag(s)
                    inv((rank_p, h_out_p)),     # U_r^T
                    inv((1, h_out_p)),          # bias
                    inv((1, h_out_p)),          # LN gamma
                    inv((1, h_out_p)),          # LN beta
                ],
                out_specs=pl.BlockSpec((tm_eff, h_out_p), lambda i: (i, 0)),
            ),
            compiler_params=compiler_params,
            cost_estimate=cost,
        )(x2d, weights.vts, weights.ut, weights.bias, weights.gamma, weights.beta)

    try:
        out2d = call_kernel(True)
    except Exception:
        # TODO(synk): jax build without BlockSpec pipeline_mode / Buffered(1)
        # support for the TPU pipeline; fall back to default double-buffering.
        out2d = call_kernel(False)

    if h_out_p != h_out:
        out2d = out2d[:, :h_out]   # only when h_out is not lane-aligned (toy dims)
    return out2d.reshape(B, S, h_out)


def make_params(key, h_in, h_out, rank):
    """Deterministically build SvdLayer parameters from a synthetic dense layer."""
    kw, kb, kg, kbeta = jax.random.split(key, 4)
    weight = jax.random.normal(kw, (h_out, h_in), jnp.float32) * 0.05
    bias = jax.random.normal(kb, (h_out,), jnp.float32) * 0.01
    gamma = 1.0 + 0.1 * jax.random.normal(kg, (h_out,), jnp.float32)
    beta = 0.1 * jax.random.normal(kbeta, (h_out,), jnp.float32)
    # SVD factorization, mirroring torch.linalg.svd (full_matrices=True).
    u, s, vh = jnp.linalg.svd(weight, full_matrices=True)
    return (u[:, :rank], s[:rank], vh[:rank], bias, gamma, beta), weight


def reference_forward(hidden_states, params, eps=1e-12):
    u_r, s_vec, v_r, bias, gamma, beta = params
    h = hidden_states @ v_r.T
    h = h * s_vec                        # diag(s) linear layer
    h = h @ u_r.T + bias
    mean = jnp.mean(h, axis=-1, keepdims=True)
    var = jnp.mean((h - mean) ** 2, axis=-1, keepdims=True)
    return (h - mean) * jax.lax.rsqrt(var + eps) * gamma + beta


if __name__ == "__main__":
    key = jax.random.PRNGKey(0)

    def check(k, B, S, h_in, h_out, rank, mxu_dtype, tol, tm=512):
        kx, ki, kp = jax.random.split(k, 3)
        hidden_states = jax.random.normal(kx, (B, S, h_in), jnp.float32)
        input_tensor = jax.random.normal(ki, (B, S, h_out), jnp.float32)  # unused
        params, _ = make_params(kp, h_in, h_out, rank)
        weights = prepare_svd_weights(params, mxu_dtype=mxu_dtype)
        out = svd_layer_forward(hidden_states, input_tensor, weights, tm=tm)
        out = jax.block_until_ready(out)
        ref = reference_forward(hidden_states, params)
        assert out.shape == (B, S, h_out)
        err = float(jnp.max(jnp.abs(out - ref)))
        assert err < tol, f"mismatch vs reference: max abs err {err:.3e} > {tol:.1e}"

    k1, k2, k3 = jax.random.split(key, 3)
    # Exact f32 MXU operand path (tight tolerance).
    check(k1, B=2, S=8, h_in=64, h_out=32, rank=8, mxu_dtype=jnp.float32, tol=2e-5)
    # Ragged last row tile: M=15 with tm=8 -> 2 grid steps, 7 valid rows in the last.
    check(k2, B=3, S=5, h_in=64, h_out=32, rank=8, mxu_dtype=jnp.float32, tol=2e-5, tm=8)
    # Default bf16 MXU operand path (f32 accumulation); numerics-visible -> sanity tol.
    check(k3, B=2, S=8, h_in=64, h_out=32, rank=8, mxu_dtype=jnp.bfloat16, tol=1e-1)

    print("KERNEL_OK")
</pallas_src>

<mosaic_0001>
module attributes {stable_mosaic.version = 11 : i64} {
  func.func @_svd_layer_kernel(%arg0: i32, %arg1: memref<16x64xf32, #tpu.memory_space<vmem>>, %arg2: memref<64x128xf32, #tpu.memory_space<vmem>>, %arg3: memref<128x128xf32, #tpu.memory_space<vmem>>, %arg4: memref<1x128xf32, #tpu.memory_space<vmem>>, %arg5: memref<1x128xf32, #tpu.memory_space<vmem>>, %arg6: memref<1x128xf32, #tpu.memory_space<vmem>>, %arg7: memref<16x128xf32, #tpu.memory_space<vmem>>) attributes {dimension_semantics = [#tpu.dimension_semantics<parallel>], iteration_bounds = array<i64: 1>, scalar_prefetch = 0 : i64, scratch_operands = 0 : i64, tpu.core_type = #tpu.core_type<tc>, window_params = [{transform_indices = @transform_0, window_bounds = array<i64: 16, 64>}, {pipeline_mode = #tpu.pipeline_mode<synchronous>, transform_indices = @transform_1, window_bounds = array<i64: 64, 128>}, {pipeline_mode = #tpu.pipeline_mode<synchronous>, transform_indices = @transform_2, window_bounds = array<i64: 128, 128>}, {pipeline_mode = #tpu.pipeline_mode<synchronous>, transform_indices = @transform_3, window_bounds = array<i64: 1, 128>}, {pipeline_mode = #tpu.pipeline_mode<synchronous>, transform_indices = @transform_4, window_bounds = array<i64: 1, 128>}, {pipeline_mode = #tpu.pipeline_mode<synchronous>, transform_indices = @transform_5, window_bounds = array<i64: 1, 128>}, {transform_indices = @transform_6, window_bounds = array<i64: 16, 128>}]} {
    %c0 = arith.constant 0 : index
    %c0_0 = arith.constant 0 : index
    %0 = vector.load %arg1[%c0, %c0_0] : memref<16x64xf32, #tpu.memory_space<vmem>>, vector<16x64xf32>
    %c0_1 = arith.constant 0 : index
    %c0_2 = arith.constant 0 : index
    %1 = vector.load %arg2[%c0_1, %c0_2] : memref<64x128xf32, #tpu.memory_space<vmem>>, vector<64x128xf32>
    %cst = arith.constant dense<0.000000e+00> : vector<16x128xf32>
    %2 = tpu.matmul %0, %1, %cst {dimension_numbers = #tpu.dot_dimension_numbers<[1], [0], [0], [1], [0, 0, 1, 1], [], []>} : vector<16x64xf32>, vector<64x128xf32>, vector<16x128xf32> -> vector<16x128xf32>
    %c0_3 = arith.constant 0 : index
    %c0_4 = arith.constant 0 : index
    %3 = vector.load %arg3[%c0_3, %c0_4] : memref<128x128xf32, #tpu.memory_space<vmem>>, vector<128x128xf32>
    %cst_5 = arith.constant dense<0.000000e+00> : vector<16x128xf32>
    %4 = tpu.matmul %2, %3, %cst_5 {dimension_numbers = #tpu.dot_dimension_numbers<[1], [0], [0], [1], [0, 0, 1, 1], [], []>} : vector<16x128xf32>, vector<128x128xf32>, vector<16x128xf32> -> vector<16x128xf32>
    %c0_6 = arith.constant 0 : index
    %c0_7 = arith.constant 0 : index
    %5 = vector.load %arg4[%c0_6, %c0_7] : memref<1x128xf32, #tpu.memory_space<vmem>>, vector<1x128xf32>
    %6 = vector.broadcast %5 : vector<1x128xf32> to vector<16x128xf32>
    %7 = arith.addf %4, %6 : vector<16x128xf32>
    %cst_8 = arith.constant dense<0.000000e+00> : vector<16xf32>
    %8 = vector.multi_reduction <add>, %7, %cst_8 [1] : vector<16x128xf32> to vector<16xf32>
    %9 = vector.shape_cast %8 : vector<16xf32> to vector<16x1xf32>
    %cst_9 = arith.constant 3.125000e-02 : f32
    %10 = vector.broadcast %cst_9 : f32 to vector<16x1xf32>
    %11 = arith.mulf %9, %10 : vector<16x1xf32>
    %12 = vector.broadcast %11 : vector<16x1xf32> to vector<16x128xf32>
    %13 = arith.subf %7, %12 : vector<16x128xf32>
    %14 = tpu.iota {dimensions = array<i32: 1>} : vector<16x128xi32>
    %c32_i32 = arith.constant 32 : i32
    %15 = vector.broadcast %c32_i32 : i32 to vector<16x128xi32>
    %16 = arith.cmpi slt, %14, %15 : vector<16x128xi32>
    %cst_10 = arith.constant 0.000000e+00 : f32
    %17 = vector.broadcast %cst_10 : f32 to vector<16x128xf32>
    %18 = arith.select %16, %13, %17 : vector<16x128xi1>, vector<16x128xf32>
    %19 = arith.mulf %18, %18 : vector<16x128xf32>
    %cst_11 = arith.constant dense<0.000000e+00> : vector<16xf32>
    %20 = vector.multi_reduction <add>, %19, %cst_11 [1] : vector<16x128xf32> to vector<16xf32>
    %21 = vector.shape_cast %20 : vector<16xf32> to vector<16x1xf32>
    %cst_12 = arith.constant 3.125000e-02 : f32
    %22 = vector.broadcast %cst_12 : f32 to vector<16x1xf32>
    %23 = arith.mulf %21, %22 : vector<16x1xf32>
    %cst_13 = arith.constant 9.99999996E-13 : f32
    %24 = vector.broadcast %cst_13 : f32 to vector<16x1xf32>
    %25 = arith.addf %23, %24 : vector<16x1xf32>
    %26 = math.rsqrt %25 : vector<16x1xf32>
    %27 = vector.broadcast %26 : vector<16x1xf32> to vector<16x128xf32>
    %28 = arith.mulf %18, %27 : vector<16x128xf32>
    %c0_14 = arith.constant 0 : index
    %c0_15 = arith.constant 0 : index
    %29 = vector.load %arg5[%c0_14, %c0_15] : memref<1x128xf32, #tpu.memory_space<vmem>>, vector<1x128xf32>
    %30 = vector.broadcast %29 : vector<1x128xf32> to vector<16x128xf32>
    %31 = arith.mulf %28, %30 : vector<16x128xf32>
    %c0_16 = arith.constant 0 : index
    %c0_17 = arith.constant 0 : index
    %32 = vector.load %arg6[%c0_16, %c0_17] : memref<1x128xf32, #tpu.memory_space<vmem>>, vector<1x128xf32>
    %33 = vector.broadcast %32 : vector<1x128xf32> to vector<16x128xf32>
    %34 = arith.addf %31, %33 : vector<16x128xf32>
    %c0_18 = arith.constant 0 : index
    %c0_19 = arith.constant 0 : index
    %35 = vector.load %arg7[%c0_18, %c0_19] : memref<16x128xf32, #tpu.memory_space<vmem>>, vector<16x128xf32>
    tpu.vector_store %arg7[%c0_18, %c0_19], %34 {strides = array<i32>} : memref<16x128xf32, #tpu.memory_space<vmem>>, vector<16x128xf32>,
    return
  }
  func.func @transform_0(%arg0: i32) -> (i32, i32) {
    %c0_i32 = arith.constant 0 : i32
    %c0_i32_0 = arith.constant 0 : i32
    return %arg0, %c0_i32 : i32, i32
  }
  func.func @transform_1(%arg0: i32) -> (i32, i32) {
    %c0_i32 = arith.constant 0 : i32
    %c0_i32_0 = arith.constant 0 : i32
    %c0_i32_1 = arith.constant 0 : i32
    return %c0_i32, %c0_i32_0 : i32, i32
  }
  func.func @transform_2(%arg0: i32) -> (i32, i32) {
    %c0_i32 = arith.constant 0 : i32
    %c0_i32_0 = arith.constant 0 : i32
    %c0_i32_1 = arith.constant 0 : i32
    return %c0_i32, %c0_i32_0 : i32, i32
  }
  func.func @transform_3(%arg0: i32) -> (i32, i32) {
    %c0_i32 = arith.constant 0 : i32
    %c0_i32_0 = arith.constant 0 : i32
    %c0_i32_1 = arith.constant 0 : i32
    return %c0_i32, %c0_i32_0 : i32, i32
  }
  func.func @transform_4(%arg0: i32) -> (i32, i32) {
    %c0_i32 = arith.constant 0 : i32
    %c0_i32_0 = arith.constant 0 : i32
    %c0_i32_1 = arith.constant 0 : i32
    return %c0_i32, %c0_i32_0 : i32, i32
  }
  func.func @transform_5(%arg0: i32) -> (i32, i32) {
    %c0_i32 = arith.constant 0 : i32
    %c0_i32_0 = arith.constant 0 : i32
    %c0_i32_1 = arith.constant 0 : i32
    return %c0_i32, %c0_i32_0 : i32, i32
  }
  func.func @transform_6(%arg0: i32) -> (i32, i32) {
    %c0_i32 = arith.constant 0 : i32
    %c0_i32_0 = arith.constant 0 : i32
    return %arg0, %c0_i32 : i32, i32
  }
}

module attributes {stable_mosaic.version = 11 : i64} {
  func.func @_svd_layer_kernel(%arg0: i32, %arg1: memref<16x64xf32, #tpu.memory_space<vmem>>, %arg2: memref<64x128xf32, #tpu.memory_space<vmem>>, %arg3: memref<128x128xf32, #tpu.memory_space<vmem>>, %arg4: memref<1x128xf32, #tpu.memory_space<vmem>>, %arg5: memref<1x128xf32, #tpu.memory_space<vmem>>, %arg6: memref<1x128xf32, #tpu.memory_space<vmem>>, %arg7: memref<16x128xf32, #tpu.memory_space<vmem>>) attributes {dimension_semantics = [#tpu.dimension_semantics<parallel>], iteration_bounds = array<i64: 1>, scalar_prefetch = 0 : i64, scratch_operands = 0 : i64, tpu.core_type = #tpu.core_type<tc>, window_params = [{transform_indices = @transform_0, window_bounds = array<i64: 16, 64>}, {pipeline_mode = #tpu.pipeline_mode<synchronous>, transform_indices = @transform_1, window_bounds = array<i64: 64, 128>}, {pipeline_mode = #tpu.pipeline_mode<synchronous>, transform_indices = @transform_2, window_bounds = array<i64: 128, 128>}, {pipeline_mode = #tpu.pipeline_mode<synchronous>, transform_indices = @transform_3, window_bounds = array<i64: 1, 128>}, {pipeline_mode = #tpu.pipeline_mode<synchronous>, transform_indices = @transform_4, window_bounds = array<i64: 1, 128>}, {pipeline_mode = #tpu.pipeline_mode<synchronous>, transform_indices = @transform_5, window_bounds = array<i64: 1, 128>}, {transform_indices = @transform_6, window_bounds = array<i64: 16, 128>}]} {
    %c0 = arith.constant 0 : index
    %c0_0 = arith.constant 0 : index
    %0 = vector.load %arg1[%c0, %c0_0] : memref<16x64xf32, #tpu.memory_space<vmem>>, vector<16x64xf32>
    %c0_1 = arith.constant 0 : index
    %c0_2 = arith.constant 0 : index
    %1 = vector.load %arg2[%c0_1, %c0_2] : memref<64x128xf32, #tpu.memory_space<vmem>>, vector<64x128xf32>
    %cst = arith.constant dense<0.000000e+00> : vector<16x128xf32>
    %2 = tpu.matmul %0, %1, %cst {dimension_numbers = #tpu.dot_dimension_numbers<[1], [0], [0], [1], [0, 0, 1, 1], [], []>} : vector<16x64xf32>, vector<64x128xf32>, vector<16x128xf32> -> vector<16x128xf32>
    %c0_3 = arith.constant 0 : index
    %c0_4 = arith.constant 0 : index
    %3 = vector.load %arg3[%c0_3, %c0_4] : memref<128x128xf32, #tpu.memory_space<vmem>>, vector<128x128xf32>
    %cst_5 = arith.constant dense<0.000000e+00> : vector<16x128xf32>
    %4 = tpu.matmul %2, %3, %cst_5 {dimension_numbers = #tpu.dot_dimension_numbers<[1], [0], [0], [1], [0, 0, 1, 1], [], []>} : vector<16x128xf32>, vector<128x128xf32>, vector<16x128xf32> -> vector<16x128xf32>
    %c0_6 = arith.constant 0 : index
    %c0_7 = arith.constant 0 : index
    %5 = vector.load %arg4[%c0_6, %c0_7] : memref<1x128xf32, #tpu.memory_space<vmem>>, vector<1x128xf32>
    %6 = vector.broadcast %5 : vector<1x128xf32> to vector<16x128xf32>
    %7 = arith.addf %4, %6 : vector<16x128xf32>
    %cst_8 = arith.constant dense<0.000000e+00> : vector<16xf32>
    %8 = vector.multi_reduction <add>, %7, %cst_8 [1] : vector<16x128xf32> to vector<16xf32>
    %9 = vector.shape_cast %8 : vector<16xf32> to vector<16x1xf32>
    %cst_9 = arith.constant 3.125000e-02 : f32
    %10 = vector.broadcast %cst_9 : f32 to vector<16x1xf32>
    %11 = arith.mulf %9, %10 : vector<16x1xf32>
    %12 = vector.broadcast %11 : vector<16x1xf32> to vector<16x128xf32>
    %13 = arith.subf %7, %12 : vector<16x128xf32>
    %14 = tpu.iota {dimensions = array<i32: 1>} : vector<16x128xi32>
    %c32_i32 = arith.constant 32 : i32
    %15 = vector.broadcast %c32_i32 : i32 to vector<16x128xi32>
    %16 = arith.cmpi slt, %14, %15 : vector<16x128xi32>
    %cst_10 = arith.constant 0.000000e+00 : f32
    %17 = vector.broadcast %cst_10 : f32 to vector<16x128xf32>
    %18 = arith.select %16, %13, %17 : vector<16x128xi1>, vector<16x128xf32>
    %19 = arith.mulf %18, %18 : vector<16x128xf32>
    %cst_11 = arith.constant dense<0.000000e+00> : vector<16xf32>
    %20 = vector.multi_reduction <add>, %19, %cst_11 [1] : vector<16x128xf32> to vector<16xf32>
    %21 = vector.shape_cast %20 : vector<16xf32> to vector<16x1xf32>
    %cst_12 = arith.constant 3.125000e-02 : f32
    %22 = vector.broadcast %cst_12 : f32 to vector<16x1xf32>
    %23 = arith.mulf %21, %22 : vector<16x1xf32>
    %cst_13 = arith.constant 9.99999996E-13 : f32
    %24 = vector.broadcast %cst_13 : f32 to vector<16x1xf32>
    %25 = arith.addf %23, %24 : vector<16x1xf32>
    %26 = math.rsqrt %25 : vector<16x1xf32>
    %27 = vector.broadcast %26 : vector<16x1xf32> to vector<16x128xf32>
    %28 = arith.mulf %18, %27 : vector<16x128xf32>
    %c0_14 = arith.constant 0 : index
    %c0_15 = arith.constant 0 : index
    %29 = vector.load %arg5[%c0_14, %c0_15] : memref<1x128xf32, #tpu.memory_space<vmem>>, vector<1x128xf32>
    %30 = vector.broadcast %29 : vector<1x128xf32> to vector<16x128xf32>
    %31 = arith.mulf %28, %30 : vector<16x128xf32>
    %c0_16 = arith.constant 0 : index
    %c0_17 = arith.constant 0 : index
    %32 = vector.load %arg6[%c0_16, %c0_17] : memref<1x128xf32, #tpu.memory_space<vmem>>, vector<1x128xf32>
    %33 = vector.broadcast %32 : vector<1x128xf32> to vector<16x128xf32>
    %34 = arith.addf %31, %33 : vector<16x128xf32>
    %c0_18 = arith.constant 0 : index
    %c0_19 = arith.constant 0 : index
    %35 = vector.load %arg7[%c0_18, %c0_19] : memref<16x128xf32, #tpu.memory_space<vmem>>, vector<16x128xf32>
    tpu.vector_store %arg7[%c0_18, %c0_19], %34 {strides = array<i32>} : memref<16x128xf32, #tpu.memory_space<vmem>>, vector<16x128xf32>,
    return
  }
  func.func @transform_0(%arg0: i32) -> (i32, i32) {
    %c0_i32 = arith.constant 0 : i32
    %c0_i32_0 = arith.constant 0 : i32
    return %arg0, %c0_i32 : i32, i32
  }
  func.func @transform_1(%arg0: i32) -> (i32, i32) {
    %c0_i32 = arith.constant 0 : i32
    %c0_i32_0 = arith.constant 0 : i32
    %c0_i32_1 = arith.constant 0 : i32
    return %c0_i32, %c0_i32_0 : i32, i32
  }
  func.func @transform_2(%arg0: i32) -> (i32, i32) {
    %c0_i32 = arith.constant 0 : i32
    %c0_i32_0 = arith.constant 0 : i32
    %c0_i32_1 = arith.constant 0 : i32
    return %c0_i32, %c0_i32_0 : i32, i32
  }
  func.func @transform_3(%arg0: i32) -> (i32, i32) {
    %c0_i32 = arith.constant 0 : i32
    %c0_i32_0 = arith.constant 0 : i32
    %c0_i32_1 = arith.constant 0 : i32
    return %c0_i32, %c0_i32_0 : i32, i32
  }
  func.func @transform_4(%arg0: i32) -> (i32, i32) {
    %c0_i32 = arith.constant 0 : i32
    %c0_i32_0 = arith.constant 0 : i32
    %c0_i32_1 = arith.constant 0 : i32
    return %c0_i32, %c0_i32_0 : i32, i32
  }
  func.func @transform_5(%arg0: i32) -> (i32, i32) {
    %c0_i32 = arith.constant 0 : i32
    %c0_i32_0 = arith.constant 0 : i32
    %c0_i32_1 = arith.constant 0 : i32
    return %c0_i32, %c0_i32_0 : i32, i32
  }
  func.func @transform_6(%arg0: i32) -> (i32, i32) {
    %c0_i32 = arith.constant 0 : i32
    %c0_i32_0 = arith.constant 0 : i32
    return %arg0, %c0_i32 : i32, i32
  }
}

</mosaic_0001>

<llo_original>
// kernel: tpu_custom_call.1
$region0: #{tpu_custom_call.1}
  #allocation0 [shape = 'u32[]', space=smem, size = 0x4, offset = 0x4, fixed_abs, tag = 'smem constant byte address 0x4 - core index']
  #allocation1 [shape = 'u32[144,128]{1,0:T(1,128)}', space=vmem, size = 0x12000, scoped, tag = 'internal scratch']
  %s0 = inlined_call_operand.hbm [shape: f32[16,64], index: 0, kind: input, shape index: {}]
  %s1 = inlined_call_operand.hbm [shape: f32[64,128], index: 1, kind: input, shape index: {}]
  %s2 = inlined_call_operand.hbm [shape: f32[128,128], index: 2, kind: input, shape index: {}]
  %s3 = inlined_call_operand.vmem [shape: f32[1,128], index: 3, kind: input, shape index: {}]
  %s4 = inlined_call_operand.vmem [shape: f32[1,128], index: 4, kind: input, shape index: {}]
  %s5 = inlined_call_operand.vmem [shape: f32[1,128], index: 5, kind: input, shape index: {}]
  %s6 = inlined_call_operand.hbm [shape: f32[16,128], index: 6, kind: output, shape index: {}]
  %s7 = sld [smem:[#allocation0]]
  $region46: #{tpu_custom_call.1} parent=0
    _
  %s9 = ssub.s32 1, %s7
  %s10 = scalar_select 0, %s9, %s7
  $region1: #{tpu_custom_call.1} parent=0
    #allocation2 [shape = 'u8[8192]{0}', space=vmem, size = 0x2000, scoped, tag = 'input window, operand 0, single buffered']
    #allocation3 [shape = 's32[1]{0}', space=sflag, size = 0x4, scoped, tag = 'scoped memory for tpu_custom_call.1']
    #allocation4 [shape = 's32[1]{0}', space=sflag, size = 0x4, scoped, tag = 'scoped memory for tpu_custom_call.1']
    #allocation5 [shape = 'u8[32768]{0}', space=vmem, size = 0x8000, scoped, tag = 'input window, operand 1, single buffered']
    #allocation6 [shape = 's32[1]{0}', space=sflag, size = 0x4, scoped, tag = 'scoped memory for tpu_custom_call.1']
    #allocation7 [shape = 'u8[65536]{0}', space=vmem, size = 0x10000, scoped, tag = 'input window, operand 2, single buffered']
    #allocation8 [shape = 'u8[8192]{0}', space=vmem, size = 0x2000, scoped, tag = 'output window, operand 0, single buffered']
    %11 = vsyncpa [#allocation3], 0
    %12 = vsyncpa [#allocation6], 0
    %13 = vsyncpa [#allocation4], 0
    // Predicated region
    $region2: #{tpu_custom_call.1} parent=1 // pred_check
      _
    $region3: #{tpu_custom_call.1} parent=1 // pred_check_branch
      %15 = sbr.rel (0) target = $region5
    $region4: #{tpu_custom_call.1} parent=1 // pred_region
      %s17 = ssub.s32 256, 256
      %18 = vsyncadd [#allocation3], %s17
      %s19 = sshll.u32 [#allocation2], 4
      %s20 = int_to_ptr.vmem [resolvable:$true] %s19
      %25 = dma.hbm_to_vmem [thread:$0]  %s0, 256, %s20, [#allocation3], 128, 128, 8
    $region5: #{tpu_custom_call.1} parent=1 // pred_fallthru
      _
    // Predicated region
    $region6: #{tpu_custom_call.1} parent=1 // pred_check
      _
    $region7: #{tpu_custom_call.1} parent=1 // pred_check_branch
      %27 = sbr.rel (0) target = $region9
    $region8: #{tpu_custom_call.1} parent=1 // pred_region
      %s29 = ssub.s32 1024, 1024
      %30 = vsyncadd [#allocation6], %s29
      %s31 = sshll.u32 [#allocation5], 4
      %s32 = int_to_ptr.vmem [resolvable:$true] %s31
      %37 = dma.hbm_to_vmem [thread:$0]  %s1, 1024, %s32, [#allocation6], 128, 128, 8
    $region9: #{tpu_custom_call.1} parent=1 // pred_fallthru
      _
    // Predicated region
    $region10: #{tpu_custom_call.1} parent=1 // pred_check
      _
    $region11: #{tpu_custom_call.1} parent=1 // pred_check_branch
      %39 = sbr.rel (0) target = $region13
    $region12: #{tpu_custom_call.1} parent=1 // pred_region
      %s41 = ssub.s32 2048, 2048
      %42 = vsyncadd [#allocation6], %s41
      %s43 = sshll.u32 [#allocation7], 4
      %s44 = int_to_ptr.vmem [resolvable:$true] %s43
      %49 = dma.hbm_to_vmem [thread:$0]  %s2, 2048, %s44, [#allocation6], 128, 128, 8
    $region13: #{tpu_custom_call.1} parent=1 // pred_fallthru
      _
    // Predicated region
    $region14: #{tpu_custom_call.1} parent=1 // pred_check
      _
    $region15: #{tpu_custom_call.1} parent=1 // pred_check_branch
      %51 = sbr.rel (0) target = $region17
    $region16: #{tpu_custom_call.1} parent=1 // pred_region
      _
    $region17: #{tpu_custom_call.1} parent=1 // pred_fallthru
      _
    // Predicated region
    $region18: #{tpu_custom_call.1} parent=1 // pred_check
      _
    $region19: #{tpu_custom_call.1} parent=1 // pred_check_branch
      %53 = sbr.rel (0) target = $region21
    $region20: #{tpu_custom_call.1} parent=1 // pred_region
      _
    $region21: #{tpu_custom_call.1} parent=1 // pred_fallthru
      _
    // Predicated region
    $region22: #{tpu_custom_call.1} parent=1 // pred_check
      _
    $region23: #{tpu_custom_call.1} parent=1 // pred_check_branch
      %55 = sbr.rel (0) target = $region25
    $region24: #{tpu_custom_call.1} parent=1 // pred_region
      _
    $region25: #{tpu_custom_call.1} parent=1 // pred_fallthru
      _
    // Predicated region
    $region26: #{tpu_custom_call.1} parent=1 // pred_check
      _
    $region27: #{tpu_custom_call.1} parent=1 // pred_check_branch
      %57 = sbr.rel (0) target = $region29
    $region28: #{tpu_custom_call.1} parent=1 // pred_region
      %58 = dma.done [#allocation3], 256
    $region29: #{tpu_custom_call.1} parent=1 // pred_fallthru
      _
    // Predicated region
    $region30: #{tpu_custom_call.1} parent=1 // pred_check
      _
    $region31: #{tpu_custom_call.1} parent=1 // pred_check_branch
      %60 = sbr.rel (0) target = $region33
    $region32: #{tpu_custom_call.1} parent=1 // pred_region
      %61 = dma.done [#allocation6], 1024
    $region33: #{tpu_custom_call.1} parent=1 // pred_fallthru
      _
    // Predicated region
    $region34: #{tpu_custom_call.1} parent=1 // pred_check
      _
    $region35: #{tpu_custom_call.1} parent=1 // pred_check_branch
      %63 = sbr.rel (0) target = $region37
    $region36: #{tpu_custom_call.1} parent=1 // pred_region
      %64 = dma.done [#allocation6], 2048
    $region37: #{tpu_custom_call.1} parent=1 // pred_fallthru
      _
    %v65 = vld [vmem:[#allocation2] sm:$0xff]
    %v66 = vld [vmem:[#allocation2 + $0x8] sm:$0xff]
    %v67 = vld [vmem:[#allocation5] sm:$0xff]
    %v68 = vld [vmem:[#allocation5 + $0x8] sm:$0xff]
    %v69 = vld [vmem:[#allocation5 + $0x10] sm:$0xff]
    %v70 = vld [vmem:[#allocation5 + $0x18] sm:$0xff]
    %v71 = vld [vmem:[#allocation5 + $0x20] sm:$0xff]
    %v72 = vld [vmem:[#allocation5 + $0x28] sm:$0xff]
    %v73 = vld [vmem:[#allocation5 + $0x30] sm:$0xff]
    %v74 = vld [vmem:[#allocation5 + $0x38] sm:$0xff]
    %vm75 = vcmask 523264
    %v77 = vsel %vm75, %v65, 0
    %v80 = vsel %vm75, %v66, 0
    %82 = vmatprep.subr.mxu0 0.0
    %83 = vmatpush1.msra.mxu0 %v67
    %84 = vmatprep.subr.mxu0 0.0
    %85 = vmatpush1.msra.mxu0 %v68
    %86 = vmatprep.subr.mxu0 0.0
    %87 = vmatpush1.msra.mxu0 %v69
    %88 = vmatprep.subr.mxu0 0.0
    %89 = vmatpush1.msra.mxu0 %v70
    %90 = vmatprep.subr.mxu0 0.0
    %91 = vmatpush1.msra.mxu0 %v71
    %92 = vmatprep.subr.mxu0 0.0
    %93 = vmatpush1.msra.mxu0 %v72
    %94 = vmatprep.subr.mxu0 0.0
    %95 = vmatpush1.msra.mxu0 %v73
    %96 = vmatprep.subr.mxu0 0.0
    %97 = vmatpush1.msra.mxu0 %v74
    %98 = vmatprep.subr.mxu0 0.0
    %99 = vmatpush1.msra.mxu0 0.0
    %100 = vmatprep.subr.mxu0 0.0
    %101 = vmatpush1.msra.mxu0 0.0
    %102 = vmatprep.subr.mxu0 0.0
    %103 = vmatpush1.msra.mxu0 0.0
    %104 = vmatprep.subr.mxu0 0.0
    %105 = vmatpush1.msra.mxu0 0.0
    %106 = vmatprep.subr.mxu0 0.0
    %107 = vmatpush1.msra.mxu0 0.0
    %108 = vmatprep.subr.mxu0 0.0
    %109 = vmatpush1.msra.mxu0 0.0
    %110 = vmatprep.subr.mxu0 0.0
    %111 = vmatpush1.msra.mxu0 0.0
    %112 = vmatprep.subr.mxu0 0.0
    %113 = vmatpush1.msra.mxu0 0.0
    %114 = vmatprep.subr.mxu0 0.0
    %115 = vmatpush1.msra.mxu0 0.0
    %116 = vmatprep.subr.mxu0 0.0
    %117 = vmatpush1.msra.mxu0 0.0
    %118 = vmatprep.subr.mxu0 0.0
    %119 = vmatpush1.msra.mxu0 0.0
    %120 = vmatprep.subr.mxu0 0.0
    %121 = vmatpush1.msra.mxu0 0.0
    %122 = vmatprep.subr.mxu0 0.0
    %123 = vmatpush1.msra.mxu0 0.0
    %124 = vmatprep.subr.mxu0 0.0
    %125 = vmatpush1.msra.mxu0 0.0
    %126 = vmatprep.subr.mxu0 0.0
    %127 = vmatpush1.msra.mxu0 0.0
    %128 = vmatprep.subr.mxu0 0.0
    %129 = vmatpush1.msra.mxu0 0.0
    %130 = vmatprep.subr.mxu0 0.0
    %131 = vmatpush1.msra.mxu0 0.0
    %132 = vmatprep.subr.mxu0 0.0
    %133 = vmatpush1.msra.mxu0 0.0
    %134 = vmatprep.subr.mxu0 0.0
    %135 = vmatpush1.msra.mxu0 0.0
    %136 = vmatprep.subr.mxu0 0.0
    %137 = vmatpush1.msra.mxu0 0.0
    %138 = vmatprep.subr.mxu0 0.0
    %139 = vmatpush1.msra.mxu0 0.0
    %140 = vmatprep.subr.mxu0 0.0
    %141 = vmatpush1.msra.mxu0 0.0
    %142 = vmatprep.subr.mxu0 0.0
    %143 = vmatpush1.msra.mxu0 0.0
    %144 = vmatprep.subr.mxu0 0.0
    %145 = vmatpush1.msra.mxu0 0.0
    %146 = vmatprep.mubr.f32.mxu0 0.0
    %147 = vmatmul.mubr.f32.gmra.mrb[0].mxu0 %v77
    %v148 = vpop.f32.mrb[0].mxu0
    %v149 = vadd.f32 0.0, %v148
    %v150 = vpop.f32.mrb[0].mxu0
    %151 = vmatprep.mubr.f32.mxu0 0.0
    %152 = vmatmul.mubr.f32.gmra.mrb[0].mxu0 %v80
    %v153 = vpop.f32.mrb[0].mxu0
    %v154 = vadd.f32 0.0, %v153
    %v155 = vpop.f32.mrb[0].mxu0
    %156 = vdwg.mxu0
    %v157 = vld [vmem:[#allocation7] sm:$0xff]
    %v158 = vld [vmem:[#allocation7 + $0x8] sm:$0xff]
    %v159 = vld [vmem:[#allocation7 + $0x10] sm:$0xff]
    %v160 = vld [vmem:[#allocation7 + $0x18] sm:$0xff]
    %v161 = vld [vmem:[#allocation7 + $0x20] sm:$0xff]
    %v162 = vld [vmem:[#allocation7 + $0x28] sm:$0xff]
    %v163 = vld [vmem:[#allocation7 + $0x30] sm:$0xff]
    %v164 = vld [vmem:[#allocation7 + $0x38] sm:$0xff]
    %v165 = vld [vmem:[#allocation7 + $0x40] sm:$0xff]
    %v166 = vld [vmem:[#allocation7 + $0x48] sm:$0xff]
    %v167 = vld [vmem:[#allocation7 + $0x50] sm:$0xff]
    %v168 = vld [vmem:[#allocation7 + $0x58] sm:$0xff]
    %v169 = vld [vmem:[#allocation7 + $0x60] sm:$0xff]
    %v170 = vld [vmem:[#allocation7 + $0x68] sm:$0xff]
    %v171 = vld [vmem:[#allocation7 + $0x70] sm:$0xff]
    %v172 = vld [vmem:[#allocation7 + $0x78] sm:$0xff]
    %v173 = vld [vmem:[%s3] sm:$0x1]
    %v175 = vlaneseq
    %v176 = vshrl.u32 %v175, 7
    %v177 = vsub.s32 0, %v176
    %v178 = vrot.slane %v173, %v177
    %180 = vmatprep.subr.mxu0 0.0
    %181 = vmatpush1.msra.mxu0 %v157
    %182 = vmatprep.subr.mxu0 0.0
    %183 = vmatpush1.msra.mxu0 %v158
    %184 = vmatprep.subr.mxu0 0.0
    %185 = vmatpush1.msra.mxu0 %v159
    %186 = vmatprep.subr.mxu0 0.0
    %187 = vmatpush1.msra.mxu0 %v160
    %188 = vmatprep.subr.mxu0 0.0
    %189 = vmatpush1.msra.mxu0 %v161
    %190 = vmatprep.subr.mxu0 0.0
    %191 = vmatpush1.msra.mxu0 %v162
    %192 = vmatprep.subr.mxu0 0.0
    %193 = vmatpush1.msra.mxu0 %v163
    %194 = vmatprep.subr.mxu0 0.0
    %195 = vmatpush1.msra.mxu0 %v164
    %196 = vmatprep.subr.mxu0 0.0
    %197 = vmatpush1.msra.mxu0 %v165
    %198 = vmatprep.subr.mxu0 0.0
    %199 = vmatpush1.msra.mxu0 %v166
    %200 = vmatprep.subr.mxu0 0.0
    %201 = vmatpush1.msra.mxu0 %v167
    %202 = vmatprep.subr.mxu0 0.0
    %203 = vmatpush1.msra.mxu0 %v168
    %204 = vmatprep.subr.mxu0 0.0
    %205 = vmatpush1.msra.mxu0 %v169
    %206 = vmatprep.subr.mxu0 0.0
    %207 = vmatpush1.msra.mxu0 %v170
    %208 = vmatprep.subr.mxu0 0.0
    %209 = vmatpush1.msra.mxu0 %v171
    %210 = vmatprep.subr.mxu0 0.0
    %211 = vmatpush1.msra.mxu0 %v172
    %212 = vmatprep.subr.mxu0 0.0
    %213 = vmatpush1.msra.mxu0 0.0
    %214 = vmatprep.subr.mxu0 0.0
    %215 = vmatpush1.msra.mxu0 0.0
    %216 = vmatprep.subr.mxu0 0.0
    %217 = vmatpush1.msra.mxu0 0.0
    %218 = vmatprep.subr.mxu0 0.0
    %219 = vmatpush1.msra.mxu0 0.0
    %220 = vmatprep.subr.mxu0 0.0
    %221 = vmatpush1.msra.mxu0 0.0
    %222 = vmatprep.subr.mxu0 0.0
    %223 = vmatpush1.msra.mxu0 0.0
    %224 = vmatprep.subr.mxu0 0.0
    %225 = vmatpush1.msra.mxu0 0.0
    %226 = vmatprep.subr.mxu0 0.0
    %227 = vmatpush1.msra.mxu0 0.0
    %228 = vmatprep.subr.mxu0 0.0
    %229 = vmatpush1.msra.mxu0 0.0
    %230 = vmatprep.subr.mxu0 0.0
    %231 = vmatpush1.msra.mxu0 0.0
    %232 = vmatprep.subr.mxu0 0.0
    %233 = vmatpush1.msra.mxu0 0.0
    %234 = vmatprep.subr.mxu0 0.0
    %235 = vmatpush1.msra.mxu0 0.0
    %236 = vmatprep.subr.mxu0 0.0
    %237 = vmatpush1.msra.mxu0 0.0
    %238 = vmatprep.subr.mxu0 0.0
    %239 = vmatpush1.msra.mxu0 0.0
    %240 = vmatprep.subr.mxu0 0.0
    %241 = vmatpush1.msra.mxu0 0.0
    %242 = vmatprep.subr.mxu0 0.0
    %243 = vmatpush1.msra.mxu0 0.0
    %244 = vmatprep.mubr.f32.mxu0 0.0
    %245 = vmatmul.mubr.f32.gmra.mrb[0].mxu0 %v149
    %v246 = vpop.f32.mrb[0].mxu0
    %v247 = vadd.f32 %v178, %v246
    %v248 = vpop.f32.mrb[0].mxu0
    %249 = vmatprep.mubr.f32.mxu0 0.0
    %250 = vmatmul.mubr.f32.gmra.mrb[0].mxu0 %v154
    %v251 = vpop.f32.mrb[0].mxu0
    %v252 = vadd.f32 %v178, %v251
    %v253 = vpop.f32.mrb[0].mxu0
    %254 = vdwg.mxu0
    %255 = vadd.xlane.f32.xlu0 %v247
    %v256 = vpop.xlane.xlu0 %255
    %257 = vadd.xlane.f32.xlu0 %v252
    %v258 = vpop.xlane.xlu0 %257
    %v259 = vmul.f32 %v256, 0.03125
    %v260 = vmul.f32 %v258, 0.03125
    %v261 = vsub.f32 %v247, %v259
    %v262 = vsub.f32 %v252, %v260
    %v263 = vlaneseq
    %v264 = vand.u32 %v263, 127
    %vm265 = vcmp.lt.s32.totalorder %v264, 32
    %v266 = vsel %vm265, %v261, 0.0
    %v267 = vsel %vm265, %v262, 0.0
    %v268 = vmul.f32 %v266, %v266
    %v269 = vmul.f32 %v267, %v267
    %270 = vadd.xlane.f32.xlu0 %v268
    %v271 = vpop.xlane.xlu0 %270
    %272 = vadd.xlane.f32.xlu0 %v269
    %v273 = vpop.xlane.xlu0 %272
    %v274 = vmul.f32 %v271, 0.03125
    %v275 = vmul.f32 %v273, 0.03125
    %v276 = vadd.f32 %v274, 1e-12
    %v277 = vadd.f32 %v275, 1e-12
    %v278 = vrsqrt.pop %v276
    %v279 = vrsqrt.pop %v277
    %v280 = vmul.f32 %v266, %v278
    %v281 = vmul.f32 %v267, %v279
    %v282 = vld [vmem:[%s4] sm:$0x1]
    %v284 = vlaneseq
    %v285 = vshrl.u32 %v284, 7
    %v286 = vsub.s32 0, %v285
    %v287 = vrot.slane %v282, %v286
    %v289 = vmul.f32 %v280, %v287
    %v290 = vmul.f32 %v281, %v287
    %v291 = vld [vmem:[%s5] sm:$0x1]
    %v293 = vlaneseq
    %v294 = vshrl.u32 %v293, 7
    %v295 = vsub.s32 0, %v294
    %v296 = vrot.slane %v291, %v295
    %v298 = vadd.f32 %v289, %v296
    %v299 = vadd.f32 %v290, %v296
    %300 = vst [vmem:[#allocation8] sm:$0xff] %v298
    %301 = vst [vmem:[#allocation8 + $0x8] sm:$0xff] %v299
    // Predicated region
    $region38: #{tpu_custom_call.1} parent=1 // pred_check
      _
    $region39: #{tpu_custom_call.1} parent=1 // pred_check_branch
      %303 = sbr.rel (0) target = $region41
    $region40: #{tpu_custom_call.1} parent=1 // pred_region
      %s305 = ssub.s32 256, 256
      %306 = vsyncadd [#allocation4], %s305
      %s307 = sshll.u32 [#allocation8], 4
      %s308 = int_to_ptr.vmem [resolvable:$true] %s307
      %313 = dma.vmem_to_hbm [thread:$0]  %s308, 256, %s6, [#allocation4], 128, 128, 8
    $region41: #{tpu_custom_call.1} parent=1 // pred_fallthru
      _
    // Predicated region
    $region42: #{tpu_custom_call.1} parent=1 // pred_check
      _
    $region43: #{tpu_custom_call.1} parent=1 // pred_check_branch
      %315 = sbr.rel (0) target = $region45
    $region44: #{tpu_custom_call.1} parent=1 // pred_region
      %316 = dma.done [#allocation4], 256
    $region45: #{tpu_custom_call.1} parent=1 // pred_fallthru
      _
    %317 = vsyncpa [#allocation3], 1
    %318 = vsyncpa [#allocation6], 1
    %319 = vsyncpa [#allocation4], 1

// kernel: tpu_custom_call.1
$region0: #{tpu_custom_call.1}
  #allocation0 [shape = 'u32[]', space=smem, size = 0x4, offset = 0x4, fixed_abs, tag = 'smem constant byte address 0x4 - core index']
  #allocation1 [shape = 'u32[144,128]{1,0:T(1,128)}', space=vmem, size = 0x12000, scoped, tag = 'internal scratch']
  %s0 = inlined_call_operand.hbm [shape: f32[16,64], index: 0, kind: input, shape index: {}]
  %s1 = inlined_call_operand.hbm [shape: f32[64,128], index: 1, kind: input, shape index: {}]
  %s2 = inlined_call_operand.hbm [shape: f32[128,128], index: 2, kind: input, shape index: {}]
  %s3 = inlined_call_operand.vmem [shape: f32[1,128], index: 3, kind: input, shape index: {}]
  %s4 = inlined_call_operand.vmem [shape: f32[1,128], index: 4, kind: input, shape index: {}]
  %s5 = inlined_call_operand.vmem [shape: f32[1,128], index: 5, kind: input, shape index: {}]
  %s6 = inlined_call_operand.hbm [shape: f32[16,128], index: 6, kind: output, shape index: {}]
  %s7 = sld [smem:[#allocation0]]
  $region46: #{tpu_custom_call.1} parent=0
    _
  %s9 = ssub.s32 1, %s7
  %s10 = scalar_select 0, %s9, %s7
  $region1: #{tpu_custom_call.1} parent=0
    #allocation2 [shape = 'u8[8192]{0}', space=vmem, size = 0x2000, scoped, tag = 'input window, operand 0, single buffered']
    #allocation3 [shape = 's32[1]{0}', space=sflag, size = 0x4, scoped, tag = 'scoped memory for tpu_custom_call.1']
    #allocation4 [shape = 's32[1]{0}', space=sflag, size = 0x4, scoped, tag = 'scoped memory for tpu_custom_call.1']
    #allocation5 [shape = 'u8[32768]{0}', space=vmem, size = 0x8000, scoped, tag = 'input window, operand 1, single buffered']
    #allocation6 [shape = 's32[1]{0}', space=sflag, size = 0x4, scoped, tag = 'scoped memory for tpu_custom_call.1']
    #allocation7 [shape = 'u8[65536]{0}', space=vmem, size = 0x10000, scoped, tag = 'input window, operand 2, single buffered']
    #allocation8 [shape = 'u8[8192]{0}', space=vmem, size = 0x2000, scoped, tag = 'output window, operand 0, single buffered']
    %11 = vsyncpa [#allocation3], 0
    %12 = vsyncpa [#allocation6], 0
    %13 = vsyncpa [#allocation4], 0
    // Predicated region
    $region2: #{tpu_custom_call.1} parent=1 // pred_check
      _
    $region3: #{tpu_custom_call.1} parent=1 // pred_check_branch
      %15 = sbr.rel (0) target = $region5
    $region4: #{tpu_custom_call.1} parent=1 // pred_region
      %s17 = ssub.s32 256, 256
      %18 = vsyncadd [#allocation3], %s17
      %s19 = sshll.u32 [#allocation2], 4
      %s20 = int_to_ptr.vmem [resolvable:$true] %s19
      %25 = dma.hbm_to_vmem [thread:$0]  %s0, 256, %s20, [#allocation3], 128, 128, 8
    $region5: #{tpu_custom_call.1} parent=1 // pred_fallthru
      _
    // Predicated region
    $region6: #{tpu_custom_call.1} parent=1 // pred_check
      _
    $region7: #{tpu_custom_call.1} parent=1 // pred_check_branch
      %27 = sbr.rel (0) target = $region9
    $region8: #{tpu_custom_call.1} parent=1 // pred_region
      %s29 = ssub.s32 1024, 1024
      %30 = vsyncadd [#allocation6], %s29
      %s31 = sshll.u32 [#allocation5], 4
      %s32 = int_to_ptr.vmem [resolvable:$true] %s31
      %37 = dma.hbm_to_vmem [thread:$0]  %s1, 1024, %s32, [#allocation6], 128, 128, 8
    $region9: #{tpu_custom_call.1} parent=1 // pred_fallthru
      _
    // Predicated region
    $region10: #{tpu_custom_call.1} parent=1 // pred_check
      _
    $region11: #{tpu_custom_call.1} parent=1 // pred_check_branch
      %39 = sbr.rel (0) target = $region13
    $region12: #{tpu_custom_call.1} parent=1 // pred_region
      %s41 = ssub.s32 2048, 2048
      %42 = vsyncadd [#allocation6], %s41
      %s43 = sshll.u32 [#allocation7], 4
      %s44 = int_to_ptr.vmem [resolvable:$true] %s43
      %49 = dma.hbm_to_vmem [thread:$0]  %s2, 2048, %s44, [#allocation6], 128, 128, 8
    $region13: #{tpu_custom_call.1} parent=1 // pred_fallthru
      _
    // Predicated region
    $region14: #{tpu_custom_call.1} parent=1 // pred_check
      _
    $region15: #{tpu_custom_call.1} parent=1 // pred_check_branch
      %51 = sbr.rel (0) target = $region17
    $region16: #{tpu_custom_call.1} parent=1 // pred_region
      _
    $region17: #{tpu_custom_call.1} parent=1 // pred_fallthru
      _
    // Predicated region
    $region18: #{tpu_custom_call.1} parent=1 // pred_check
      _
    $region19: #{tpu_custom_call.1} parent=1 // pred_check_branch
      %53 = sbr.rel (0) target = $region21
    $region20: #{tpu_custom_call.1} parent=1 // pred_region
      _
    $region21: #{tpu_custom_call.1} parent=1 // pred_fallthru
      _
    // Predicated region
    $region22: #{tpu_custom_call.1} parent=1 // pred_check
      _
    $region23: #{tpu_custom_call.1} parent=1 // pred_check_branch
      %55 = sbr.rel (0) target = $region25
    $region24: #{tpu_custom_call.1} parent=1 // pred_region
      _
    $region25: #{tpu_custom_call.1} parent=1 // pred_fallthru
      _
    // Predicated region
    $region26: #{tpu_custom_call.1} parent=1 // pred_check
      _
    $region27: #{tpu_custom_call.1} parent=1 // pred_check_branch
      %57 = sbr.rel (0) target = $region29
    $region28: #{tpu_custom_call.1} parent=1 // pred_region
      %58 = dma.done [#allocation3], 256
    $region29: #{tpu_custom_call.1} parent=1 // pred_fallthru
      _
    // Predicated region
    $region30: #{tpu_custom_call.1} parent=1 // pred_check
      _
    $region31: #{tpu_custom_call.1} parent=1 // pred_check_branch
      %60 = sbr.rel (0) target = $region33
    $region32: #{tpu_custom_call.1} parent=1 // pred_region
      %61 = dma.done [#allocation6], 1024
    $region33: #{tpu_custom_call.1} parent=1 // pred_fallthru
      _
    // Predicated region
    $region34: #{tpu_custom_call.1} parent=1 // pred_check
      _
    $region35: #{tpu_custom_call.1} parent=1 // pred_check_branch
      %63 = sbr.rel (0) target = $region37
    $region36: #{tpu_custom_call.1} parent=1 // pred_region
      %64 = dma.done [#allocation6], 2048
    $region37: #{tpu_custom_call.1} parent=1 // pred_fallthru
      _
    %v65 = vld [vmem:[#allocation2] sm:$0xff]
    %v66 = vld [vmem:[#allocation2 + $0x8] sm:$0xff]
    %v67 = vld [vmem:[#allocation5] sm:$0xff]
    %v68 = vld [vmem:[#allocation5 + $0x8] sm:$0xff]
    %v69 = vld [vmem:[#allocation5 + $0x10] sm:$0xff]
    %v70 = vld [vmem:[#allocation5 + $0x18] sm:$0xff]
    %v71 = vld [vmem:[#allocation5 + $0x20] sm:$0xff]
    %v72 = vld [vmem:[#allocation5 + $0x28] sm:$0xff]
    %v73 = vld [vmem:[#allocation5 + $0x30] sm:$0xff]
    %v74 = vld [vmem:[#allocation5 + $0x38] sm:$0xff]
    %vm75 = vcmask 523264
    %v77 = vsel %vm75, %v65, 0
    %v80 = vsel %vm75, %v66, 0
    %82 = vmatprep.subr.mxu0 0.0
    %83 = vmatpush1.msra.mxu0 %v67
    %84 = vmatprep.subr.mxu0 0.0
    %85 = vmatpush1.msra.mxu0 %v68
    %86 = vmatprep.subr.mxu0 0.0
    %87 = vmatpush1.msra.mxu0 %v69
    %88 = vmatprep.subr.mxu0 0.0
    %89 = vmatpush1.msra.mxu0 %v70
    %90 = vmatprep.subr.mxu0 0.0
    %91 = vmatpush1.msra.mxu0 %v71
    %92 = vmatprep.subr.mxu0 0.0
    %93 = vmatpush1.msra.mxu0 %v72
    %94 = vmatprep.subr.mxu0 0.0
    %95 = vmatpush1.msra.mxu0 %v73
    %96 = vmatprep.subr.mxu0 0.0
    %97 = vmatpush1.msra.mxu0 %v74
    %98 = vmatprep.subr.mxu0 0.0
    %99 = vmatpush1.msra.mxu0 0.0
    %100 = vmatprep.subr.mxu0 0.0
    %101 = vmatpush1.msra.mxu0 0.0
    %102 = vmatprep.subr.mxu0 0.0
    %103 = vmatpush1.msra.mxu0 0.0
    %104 = vmatprep.subr.mxu0 0.0
    %105 = vmatpush1.msra.mxu0 0.0
    %106 = vmatprep.subr.mxu0 0.0
    %107 = vmatpush1.msra.mxu0 0.0
    %108 = vmatprep.subr.mxu0 0.0
    %109 = vmatpush1.msra.mxu0 0.0
    %110 = vmatprep.subr.mxu0 0.0
    %111 = vmatpush1.msra.mxu0 0.0
    %112 = vmatprep.subr.mxu0 0.0
    %113 = vmatpush1.msra.mxu0 0.0
    %114 = vmatprep.subr.mxu0 0.0
    %115 = vmatpush1.msra.mxu0 0.0
    %116 = vmatprep.subr.mxu0 0.0
    %117 = vmatpush1.msra.mxu0 0.0
    %118 = vmatprep.subr.mxu0 0.0
    %119 = vmatpush1.msra.mxu0 0.0
    %120 = vmatprep.subr.mxu0 0.0
    %121 = vmatpush1.msra.mxu0 0.0
    %122 = vmatprep.subr.mxu0 0.0
    %123 = vmatpush1.msra.mxu0 0.0
    %124 = vmatprep.subr.mxu0 0.0
    %125 = vmatpush1.msra.mxu0 0.0
    %126 = vmatprep.subr.mxu0 0.0
    %127 = vmatpush1.msra.mxu0 0.0
    %128 = vmatprep.subr.mxu0 0.0
    %129 = vmatpush1.msra.mxu0 0.0
    %130 = vmatprep.subr.mxu0 0.0
    %131 = vmatpush1.msra.mxu0 0.0
    %132 = vmatprep.subr.mxu0 0.0
    %133 = vmatpush1.msra.mxu0 0.0
    %134 = vmatprep.subr.mxu0 0.0
    %135 = vmatpush1.msra.mxu0 0.0
    %136 = vmatprep.subr.mxu0 0.0
    %137 = vmatpush1.msra.mxu0 0.0
    %138 = vmatprep.subr.mxu0 0.0
    %139 = vmatpush1.msra.mxu0 0.0
    %140 = vmatprep.subr.mxu0 0.0
    %141 = vmatpush1.msra.mxu0 0.0
    %142 = vmatprep.subr.mxu0 0.0
    %143 = vmatpush1.msra.mxu0 0.0
    %144 = vmatprep.subr.mxu0 0.0
    %145 = vmatpush1.msra.mxu0 0.0
    %146 = vmatprep.mubr.f32.mxu0 0.0
    %147 = vmatmul.mubr.f32.gmra.mrb[0].mxu0 %v77
    %v148 = vpop.f32.mrb[0].mxu0
    %v149 = vadd.f32 0.0, %v148
    %v150 = vpop.f32.mrb[0].mxu0
    %151 = vmatprep.mubr.f32.mxu0 0.0
    %152 = vmatmul.mubr.f32.gmra.mrb[0].mxu0 %v80
    %v153 = vpop.f32.mrb[0].mxu0
    %v154 = vadd.f32 0.0, %v153
    %v155 = vpop.f32.mrb[0].mxu0
    %156 = vdwg.mxu0
    %v157 = vld [vmem:[#allocation7] sm:$0xff]
    %v158 = vld [vmem:[#allocation7 + $0x8] sm:$0xff]
    %v159 = vld [vmem:[#allocation7 + $0x10] sm:$0xff]
    %v160 = vld [vmem:[#allocation7 + $0x18] sm:$0xff]
    %v161 = vld [vmem:[#allocation7 + $0x20] sm:$0xff]
    %v162 = vld [vmem:[#allocation7 + $0x28] sm:$0xff]
    %v163 = vld [vmem:[#allocation7 + $0x30] sm:$0xff]
    %v164 = vld [vmem:[#allocation7 + $0x38] sm:$0xff]
    %v165 = vld [vmem:[#allocation7 + $0x40] sm:$0xff]
    %v166 = vld [vmem:[#allocation7 + $0x48] sm:$0xff]
    %v167 = vld [vmem:[#allocation7 + $0x50] sm:$0xff]
    %v168 = vld [vmem:[#allocation7 + $0x58] sm:$0xff]
    %v169 = vld [vmem:[#allocation7 + $0x60] sm:$0xff]
    %v170 = vld [vmem:[#allocation7 + $0x68] sm:$0xff]
    %v171 = vld [vmem:[#allocation7 + $0x70] sm:$0xff]
    %v172 = vld [vmem:[#allocation7 + $0x78] sm:$0xff]
    %v173 = vld [vmem:[%s3] sm:$0x1]
    %v175 = vlaneseq
    %v176 = vshrl.u32 %v175, 7
    %v177 = vsub.s32 0, %v176
    %v178 = vrot.slane %v173, %v177
    %180 = vmatprep.subr.mxu0 0.0
    %181 = vmatpush1.msra.mxu0 %v157
    %182 = vmatprep.subr.mxu0 0.0
    %183 = vmatpush1.msra.mxu0 %v158
    %184 = vmatprep.subr.mxu0 0.0
    %185 = vmatpush1.msra.mxu0 %v159
    %186 = vmatprep.subr.mxu0 0.0
    %187 = vmatpush1.msra.mxu0 %v160
    %188 = vmatprep.subr.mxu0 0.0
    %189 = vmatpush1.msra.mxu0 %v161
    %190 = vmatprep.subr.mxu0 0.0
    %191 = vmatpush1.msra.mxu0 %v162
    %192 = vmatprep.subr.mxu0 0.0
    %193 = vmatpush1.msra.mxu0 %v163
    %194 = vmatprep.subr.mxu0 0.0
    %195 = vmatpush1.msra.mxu0 %v164
    %196 = vmatprep.subr.mxu0 0.0
    %197 = vmatpush1.msra.mxu0 %v165
    %198 = vmatprep.subr.mxu0 0.0
    %199 = vmatpush1.msra.mxu0 %v166
    %200 = vmatprep.subr.mxu0 0.0
    %201 = vmatpush1.msra.mxu0 %v167
    %202 = vmatprep.subr.mxu0 0.0
    %203 = vmatpush1.msra.mxu0 %v168
    %204 = vmatprep.subr.mxu0 0.0
    %205 = vmatpush1.msra.mxu0 %v169
    %206 = vmatprep.subr.mxu0 0.0
    %207 = vmatpush1.msra.mxu0 %v170
    %208 = vmatprep.subr.mxu0 0.0
    %209 = vmatpush1.msra.mxu0 %v171
    %210 = vmatprep.subr.mxu0 0.0
    %211 = vmatpush1.msra.mxu0 %v172
    %212 = vmatprep.subr.mxu0 0.0
    %213 = vmatpush1.msra.mxu0 0.0
    %214 = vmatprep.subr.mxu0 0.0
    %215 = vmatpush1.msra.mxu0 0.0
    %216 = vmatprep.subr.mxu0 0.0
    %217 = vmatpush1.msra.mxu0 0.0
    %218 = vmatprep.subr.mxu0 0.0
    %219 = vmatpush1.msra.mxu0 0.0
    %220 = vmatprep.subr.mxu0 0.0
    %221 = vmatpush1.msra.mxu0 0.0
    %222 = vmatprep.subr.mxu0 0.0
    %223 = vmatpush1.msra.mxu0 0.0
    %224 = vmatprep.subr.mxu0 0.0
    %225 = vmatpush1.msra.mxu0 0.0
    %226 = vmatprep.subr.mxu0 0.0
    %227 = vmatpush1.msra.mxu0 0.0
    %228 = vmatprep.subr.mxu0 0.0
    %229 = vmatpush1.msra.mxu0 0.0
    %230 = vmatprep.subr.mxu0 0.0
    %231 = vmatpush1.msra.mxu0 0.0
    %232 = vmatprep.subr.mxu0 0.0
    %233 = vmatpush1.msra.mxu0 0.0
    %234 = vmatprep.subr.mxu0 0.0
    %235 = vmatpush1.msra.mxu0 0.0
    %236 = vmatprep.subr.mxu0 0.0
    %237 = vmatpush1.msra.mxu0 0.0
    %238 = vmatprep.subr.mxu0 0.0
    %239 = vmatpush1.msra.mxu0 0.0
    %240 = vmatprep.subr.mxu0 0.0
    %241 = vmatpush1.msra.mxu0 0.0
    %242 = vmatprep.subr.mxu0 0.0
    %243 = vmatpush1.msra.mxu0 0.0
    %244 = vmatprep.mubr.f32.mxu0 0.0
    %245 = vmatmul.mubr.f32.gmra.mrb[0].mxu0 %v149
    %v246 = vpop.f32.mrb[0].mxu0
    %v247 = vadd.f32 %v178, %v246
    %v248 = vpop.f32.mrb[0].mxu0
    %249 = vmatprep.mubr.f32.mxu0 0.0
    %250 = vmatmul.mubr.f32.gmra.mrb[0].mxu0 %v154
    %v251 = vpop.f32.mrb[0].mxu0
    %v252 = vadd.f32 %v178, %v251
    %v253 = vpop.f32.mrb[0].mxu0
    %254 = vdwg.mxu0
    %255 = vadd.xlane.f32.xlu0 %v247
    %v256 = vpop.xlane.xlu0 %255
    %257 = vadd.xlane.f32.xlu0 %v252
    %v258 = vpop.xlane.xlu0 %257
    %v259 = vmul.f32 %v256, 0.03125
    %v260 = vmul.f32 %v258, 0.03125
    %v261 = vsub.f32 %v247, %v259
    %v262 = vsub.f32 %v252, %v260
    %v263 = vlaneseq
    %v264 = vand.u32 %v263, 127
    %vm265 = vcmp.lt.s32.totalorder %v264, 32
    %v266 = vsel %vm265, %v261, 0.0
    %v267 = vsel %vm265, %v262, 0.0
    %v268 = vmul.f32 %v266, %v266
    %v269 = vmul.f32 %v267, %v267
    %270 = vadd.xlane.f32.xlu0 %v268
    %v271 = vpop.xlane.xlu0 %270
    %272 = vadd.xlane.f32.xlu0 %v269
    %v273 = vpop.xlane.xlu0 %272
    %v274 = vmul.f32 %v271, 0.03125
    %v275 = vmul.f32 %v273, 0.03125
    %v276 = vadd.f32 %v274, 1e-12
    %v277 = vadd.f32 %v275, 1e-12
    %v278 = vrsqrt.pop %v276
    %v279 = vrsqrt.pop %v277
    %v280 = vmul.f32 %v266, %v278
    %v281 = vmul.f32 %v267, %v279
    %v282 = vld [vmem:[%s4] sm:$0x1]
    %v284 = vlaneseq
    %v285 = vshrl.u32 %v284, 7
    %v286 = vsub.s32 0, %v285
    %v287 = vrot.slane %v282, %v286
    %v289 = vmul.f32 %v280, %v287
    %v290 = vmul.f32 %v281, %v287
    %v291 = vld [vmem:[%s5] sm:$0x1]
    %v293 = vlaneseq
    %v294 = vshrl.u32 %v293, 7
    %v295 = vsub.s32 0, %v294
    %v296 = vrot.slane %v291, %v295
    %v298 = vadd.f32 %v289, %v296
    %v299 = vadd.f32 %v290, %v296
    %300 = vst [vmem:[#allocation8] sm:$0xff] %v298
    %301 = vst [vmem:[#allocation8 + $0x8] sm:$0xff] %v299
    // Predicated region
    $region38: #{tpu_custom_call.1} parent=1 // pred_check
      _
    $region39: #{tpu_custom_call.1} parent=1 // pred_check_branch
      %303 = sbr.rel (0) target = $region41
    $region40: #{tpu_custom_call.1} parent=1 // pred_region
      %s305 = ssub.s32 256, 256
      %306 = vsyncadd [#allocation4], %s305
      %s307 = sshll.u32 [#allocation8], 4
      %s308 = int_to_ptr.vmem [resolvable:$true] %s307
      %313 = dma.vmem_to_hbm [thread:$0]  %s308, 256, %s6, [#allocation4], 128, 128, 8
    $region41: #{tpu_custom_call.1} parent=1 // pred_fallthru
      _
    // Predicated region
    $region42: #{tpu_custom_call.1} parent=1 // pred_check
      _
    $region43: #{tpu_custom_call.1} parent=1 // pred_check_branch
      %315 = sbr.rel (0) target = $region45
    $region44: #{tpu_custom_call.1} parent=1 // pred_region
      %316 = dma.done [#allocation4], 256
    $region45: #{tpu_custom_call.1} parent=1 // pred_fallthru
      _
    %317 = vsyncpa [#allocation3], 1
    %318 = vsyncpa [#allocation6], 1
    %319 = vsyncpa [#allocation4], 1

</llo_original>
